<compile_context>
chip_gen: v7x
topology: tpu7x:2x2x1
jax: 0.10.0
libtpu: 0.0.40
codegen_flags: <defaults>
</compile_context>

<pallas_src>
import functools

import jax
import jax.numpy as jnp
from jax import lax
from jax.experimental import pallas as pl
from jax.experimental.pallas import tpu as pltpu


def _round_up(x, m):
    return pl.cdiv(x, m) * m


def autoencoder_kernel(x_ref, w1_ref, b1_ref, w2_ref, b2_ref, out_ref):
    """Fused forward:  decoded = sigmoid(x @ W1^T + b1) @ W2^T + b2

    x_ref : (TB, input_dim)
    w1_ref: (latent_dim, input_dim)   -- PyTorch Linear layout
    b1_ref: (1, latent_dim)
    w2_ref: (input_dim, latent_dim)   -- PyTorch Linear layout
    b2_ref: (1, input_dim)
    """
    # bf16 operands feed the MXU at native rate on v5e/v6e/v7x; accumulate in f32.
    x = x_ref[...].astype(jnp.bfloat16)
    w1 = w1_ref[...].astype(jnp.bfloat16)
    w2 = w2_ref[...].astype(jnp.bfloat16)

    # Contract the shared feature axis directly -> no wrapper-side transposes.
    contract_last = (((1,), (1,)), ((), ()))

    # Encoder: Linear(input_dim -> latent_dim) + Sigmoid (f32 math).
    h = lax.dot_general(x, w1, contract_last, preferred_element_type=jnp.float32)
    encoded = jax.nn.sigmoid(h + b1_ref[...])

    # Decoder: Linear(latent_dim -> input_dim).
    d = lax.dot_general(encoded.astype(jnp.bfloat16), w2, contract_last,
                        preferred_element_type=jnp.float32)
    out_ref[...] = (d + b2_ref[...]).astype(out_ref.dtype)


@functools.partial(jax.jit, static_argnames=("block_batch",))
def autoencoder_forward(x, w1, b1, w2, b2, *, block_batch=256):
    """x: (B, input_dim). w1: (latent, input), b1: (latent,),
       w2: (input, latent), b2: (input,)  -- PyTorch Linear parameter shapes."""
    B, input_dim = x.shape
    latent_dim = w1.shape[0]

    # Batch tile: multiple of 8 sublanes, up to block_batch rows (256 keeps the
    # 2x256^2 MXU on v6e/v7x fed); pad the batch so the grid divides evenly.
    TB = min(block_batch, _round_up(B, 8))
    B_pad = _round_up(B, TB)
    if B_pad != B:
        x = jnp.pad(x, ((0, B_pad - B), (0, 0)))
    grid = (B_pad // TB,)

    # Lift biases to 2D so they are ordinary (1, N) VMEM tiles.
    b1_2d = b1.reshape(1, latent_dim)
    b2_2d = b2.reshape(1, input_dim)

    # Explicit VMEM budget: double-buffered x/out tiles + resident weights/biases
    # + headroom for in-kernel bf16 copies / f32 intermediates.  Capped at 48 MiB
    # so it always fits v7x's 64 MiB per-TC VMEM.
    itemsize = jnp.dtype(x.dtype).itemsize
    tile_bytes = TB * input_dim * itemsize
    weight_bytes = 2 * latent_dim * input_dim * jnp.dtype(w1.dtype).itemsize
    bias_bytes = (latent_dim + input_dim) * jnp.dtype(b1.dtype).itemsize
    needed = 2 * 2 * tile_bytes + weight_bytes + bias_bytes
    vmem_limit = int(min(48 * 1024 * 1024, max(3 * needed, 16 * 1024 * 1024)))

    out = pl.pallas_call(
        autoencoder_kernel,
        out_shape=jax.ShapeDtypeStruct((B_pad, input_dim), x.dtype),
        grid=grid,
        in_specs=[
            pl.BlockSpec((TB, input_dim), lambda i: (i, 0)),            # x: tiled over batch
            pl.BlockSpec((latent_dim, input_dim), lambda i: (0, 0)),    # W1: VMEM-resident
            pl.BlockSpec((1, latent_dim), lambda i: (0, 0)),            # b1: VMEM-resident
            pl.BlockSpec((input_dim, latent_dim), lambda i: (0, 0)),    # W2: VMEM-resident
            pl.BlockSpec((1, input_dim), lambda i: (0, 0)),             # b2: VMEM-resident
        ],
        out_specs=pl.BlockSpec((TB, input_dim), lambda i: (i, 0)),
        compiler_params=pltpu.CompilerParams(
            dimension_semantics=("parallel",),   # batch axis shards across v7x's 2 TCs
            vmem_limit_bytes=vmem_limit,
        ),
    )(x, w1, b1_2d, w2, b2_2d)

    return out[:B] if B_pad != B else out
    # TODO(synk): if input_dim grows to multi-K, add a reduction grid axis over
    # input_dim with an f32 VMEM accumulator instead of full-width weight tiles.


def reference_forward(x, w1, b1, w2, b2):
    encoded = jax.nn.sigmoid(x @ w1.T + b1)
    return encoded @ w2.T + b2


if __name__ == "__main__":
    key = jax.random.PRNGKey(0)
    kx, k1, k2, k3, k4, kx2 = jax.random.split(key, 6)

    # Small shapes consistent with the module: batch=8, input_dim=32,
    # latent_dim=16 (hidden_dim is unused by forward()).
    B, input_dim, latent_dim = 8, 32, 16

    x = jax.random.normal(kx, (B, input_dim), dtype=jnp.float32)
    # Deterministic parameter init in PyTorch Linear parameter shapes.
    bound1 = 1.0 / (input_dim ** 0.5)
    bound2 = 1.0 / (latent_dim ** 0.5)
    w1 = jax.random.uniform(k1, (latent_dim, input_dim), jnp.float32, -bound1, bound1)
    b1 = jax.random.uniform(k2, (latent_dim,), jnp.float32, -bound1, bound1)
    w2 = jax.random.uniform(k3, (input_dim, latent_dim), jnp.float32, -bound2, bound2)
    b2 = jax.random.uniform(k4, (input_dim,), jnp.float32, -bound2, bound2)

    out = jax.block_until_ready(autoencoder_forward(x, w1, b1, w2, b2))
    ref = reference_forward(x, w1, b1, w2, b2)
    assert out.shape == (B, input_dim)
    # bf16 MXU operands (f32 accumulation) -> slightly looser tolerance than pure f32.
    assert jnp.allclose(out, ref, atol=5e-2, rtol=5e-2), "mismatch vs reference (small batch)"

    # Second check: a batch that exercises the grid (2 tiles of 256) + padding path.
    B2 = 300
    x2 = jax.random.normal(kx2, (B2, input_dim), dtype=jnp.float32)
    out2 = jax.block_until_ready(autoencoder_forward(x2, w1, b1, w2, b2))
    ref2 = reference_forward(x2, w1, b1, w2, b2)
    assert out2.shape == (B2, input_dim)
    assert jnp.allclose(out2, ref2, atol=5e-2, rtol=5e-2), "mismatch vs reference (tiled batch)"

    print("KERNEL_OK")
</pallas_src>

<mosaic_0001>
module attributes {stable_mosaic.version = 11 : i64} {
  func.func @autoencoder_kernel(%arg0: i32, %arg1: memref<8x32xf32, #tpu.memory_space<vmem>>, %arg2: memref<16x32xf32, #tpu.memory_space<vmem>>, %arg3: memref<1x16xf32, #tpu.memory_space<vmem>>, %arg4: memref<32x16xf32, #tpu.memory_space<vmem>>, %arg5: memref<1x32xf32, #tpu.memory_space<vmem>>, %arg6: memref<8x32xf32, #tpu.memory_space<vmem>>) attributes {dimension_semantics = [#tpu.dimension_semantics<parallel>], iteration_bounds = array<i64: 1>, scalar_prefetch = 0 : i64, scratch_operands = 0 : i64, tpu.core_type = #tpu.core_type<tc>, window_params = [{transform_indices = @transform_0, window_bounds = array<i64: 8, 32>}, {pipeline_mode = #tpu.pipeline_mode<synchronous>, transform_indices = @transform_1, window_bounds = array<i64: 16, 32>}, {pipeline_mode = #tpu.pipeline_mode<synchronous>, transform_indices = @transform_2, window_bounds = array<i64: 1, 16>}, {pipeline_mode = #tpu.pipeline_mode<synchronous>, transform_indices = @transform_3, window_bounds = array<i64: 32, 16>}, {pipeline_mode = #tpu.pipeline_mode<synchronous>, transform_indices = @transform_4, window_bounds = array<i64: 1, 32>}, {transform_indices = @transform_5, window_bounds = array<i64: 8, 32>}]} {
    %c0 = arith.constant 0 : index
    %c0_0 = arith.constant 0 : index
    %0 = vector.load %arg1[%c0, %c0_0] : memref<8x32xf32, #tpu.memory_space<vmem>>, vector<8x32xf32>
    %1 = arith.truncf %0 : vector<8x32xf32> to vector<8x32xbf16>
    %c0_1 = arith.constant 0 : index
    %c0_2 = arith.constant 0 : index
    %2 = vector.load %arg2[%c0_1, %c0_2] : memref<16x32xf32, #tpu.memory_space<vmem>>, vector<16x32xf32>
    %3 = arith.truncf %2 : vector<16x32xf32> to vector<16x32xbf16>
    %c0_3 = arith.constant 0 : index
    %c0_4 = arith.constant 0 : index
    %4 = vector.load %arg4[%c0_3, %c0_4] : memref<32x16xf32, #tpu.memory_space<vmem>>, vector<32x16xf32>
    %5 = arith.truncf %4 : vector<32x16xf32> to vector<32x16xbf16>
    %cst = arith.constant dense<0.000000e+00> : vector<8x16xf32>
    %6 = tpu.matmul %1, %3, %cst {dimension_numbers = #tpu.dot_dimension_numbers<[1], [1], [0], [0], [0, 0, 1, 0], [], []>} : vector<8x32xbf16>, vector<16x32xbf16>, vector<8x16xf32> -> vector<8x16xf32>
    %c0_5 = arith.constant 0 : index
    %c0_6 = arith.constant 0 : index
    %7 = vector.load %arg3[%c0_5, %c0_6] : memref<1x16xf32, #tpu.memory_space<vmem>>, vector<1x16xf32>
    %8 = vector.broadcast %7 : vector<1x16xf32> to vector<8x16xf32>
    %9 = arith.addf %6, %8 : vector<8x16xf32>
    %10 = arith.negf %9 : vector<8x16xf32>
    %11 = math.exp %10 : vector<8x16xf32>
    %cst_7 = arith.constant 1.000000e+00 : f32
    %12 = vector.broadcast %cst_7 : f32 to vector<8x16xf32>
    %13 = arith.addf %12, %11 : vector<8x16xf32>
    %14 = arith.divf %12, %13 : vector<8x16xf32>
    %15 = arith.truncf %14 : vector<8x16xf32> to vector<8x16xbf16>
    %cst_8 = arith.constant dense<0.000000e+00> : vector<8x32xf32>
    %16 = tpu.matmul %15, %5, %cst_8 {dimension_numbers = #tpu.dot_dimension_numbers<[1], [1], [0], [0], [0, 0, 1, 0], [], []>} : vector<8x16xbf16>, vector<32x16xbf16>, vector<8x32xf32> -> vector<8x32xf32>
    %c0_9 = arith.constant 0 : index
    %c0_10 = arith.constant 0 : index
    %17 = vector.load %arg5[%c0_9, %c0_10] : memref<1x32xf32, #tpu.memory_space<vmem>>, vector<1x32xf32>
    %18 = vector.broadcast %17 : vector<1x32xf32> to vector<8x32xf32>
    %19 = arith.addf %16, %18 : vector<8x32xf32>
    %c0_11 = arith.constant 0 : index
    %c0_12 = arith.constant 0 : index
    %20 = vector.load %arg6[%c0_11, %c0_12] : memref<8x32xf32, #tpu.memory_space<vmem>>, vector<8x32xf32>
    tpu.vector_store %arg6[%c0_11, %c0_12], %19 {strides = array<i32>} : memref<8x32xf32, #tpu.memory_space<vmem>>, vector<8x32xf32>,
    return
  }
  func.func @transform_0(%arg0: i32) -> (i32, i32) {
    %c0_i32 = arith.constant 0 : i32
    %c0_i32_0 = arith.constant 0 : i32
    return %arg0, %c0_i32 : i32, i32
  }
  func.func @transform_1(%arg0: i32) -> (i32, i32) {
    %c0_i32 = arith.constant 0 : i32
    %c0_i32_0 = arith.constant 0 : i32
    %c0_i32_1 = arith.constant 0 : i32
    return %c0_i32, %c0_i32_0 : i32, i32
  }
  func.func @transform_2(%arg0: i32) -> (i32, i32) {
    %c0_i32 = arith.constant 0 : i32
    %c0_i32_0 = arith.constant 0 : i32
    %c0_i32_1 = arith.constant 0 : i32
    return %c0_i32, %c0_i32_0 : i32, i32
  }
  func.func @transform_3(%arg0: i32) -> (i32, i32) {
    %c0_i32 = arith.constant 0 : i32
    %c0_i32_0 = arith.constant 0 : i32
    %c0_i32_1 = arith.constant 0 : i32
    return %c0_i32, %c0_i32_0 : i32, i32
  }
  func.func @transform_4(%arg0: i32) -> (i32, i32) {
    %c0_i32 = arith.constant 0 : i32
    %c0_i32_0 = arith.constant 0 : i32
    %c0_i32_1 = arith.constant 0 : i32
    return %c0_i32, %c0_i32_0 : i32, i32
  }
  func.func @transform_5(%arg0: i32) -> (i32, i32) {
    %c0_i32 = arith.constant 0 : i32
    %c0_i32_0 = arith.constant 0 : i32
    return %arg0, %c0_i32 : i32, i32
  }
}

</mosaic_0001>

<llo_original>
// kernel: autoencoder_forward.1
$region0: #{autoencoder_forward.1}
  #allocation0 [shape = 'u32[]', space=smem, size = 0x4, offset = 0x4, fixed_abs, tag = 'smem constant byte address 0x4 - core index']
  #allocation1 [shape = 'u32[144,128]{1,0:T(1,128)}', space=vmem, size = 0x12000, scoped, tag = 'internal scratch']
  %s0 = inlined_call_operand.vmem [shape: f32[8,32], index: 0, kind: input, shape index: {}]
  %s1 = inlined_call_operand.vmem [shape: f32[16,32], index: 1, kind: input, shape index: {}]
  %s2 = inlined_call_operand.vmem [shape: f32[1,16], index: 2, kind: input, shape index: {}]
  %s3 = inlined_call_operand.vmem [shape: f32[32,16], index: 3, kind: input, shape index: {}]
  %s4 = inlined_call_operand.vmem [shape: f32[1,32], index: 4, kind: input, shape index: {}]
  %s5 = inlined_call_operand.hbm [shape: f32[8,32], index: 5, kind: output, shape index: {}]
  %s6 = sld [smem:[#allocation0]]
  $region30: #{autoencoder_forward.1} parent=0
    _
  %s8 = ssub.s32 1, %s6
  %s9 = scalar_select 0, %s8, %s6
  $region1: #{autoencoder_forward.1} parent=0
    #allocation2 [shape = 'u8[4096]{0}', space=vmem, size = 0x1000, scoped, tag = 'output window, operand 0, single buffered']
    #allocation3 [shape = 's32[1]{0}', space=sflag, size = 0x4, scoped, tag = 'scoped memory for autoencoder_forward.1']
    %10 = vsyncpa [#allocation3], 0
    // Predicated region
    $region2: #{autoencoder_forward.1} parent=1 // pred_check
      _
    $region3: #{autoencoder_forward.1} parent=1 // pred_check_branch
      %12 = sbr.rel (0) target = $region5
    $region4: #{autoencoder_forward.1} parent=1 // pred_region
      _
    $region5: #{autoencoder_forward.1} parent=1 // pred_fallthru
      _
    // Predicated region
    $region6: #{autoencoder_forward.1} parent=1 // pred_check
      _
    $region7: #{autoencoder_forward.1} parent=1 // pred_check_branch
      %14 = sbr.rel (0) target = $region9
    $region8: #{autoencoder_forward.1} parent=1 // pred_region
      _
    $region9: #{autoencoder_forward.1} parent=1 // pred_fallthru
      _
    // Predicated region
    $region10: #{autoencoder_forward.1} parent=1 // pred_check
      _
    $region11: #{autoencoder_forward.1} parent=1 // pred_check_branch
      %16 = sbr.rel (0) target = $region13
    $region12: #{autoencoder_forward.1} parent=1 // pred_region
      _
    $region13: #{autoencoder_forward.1} parent=1 // pred_fallthru
      _
    // Predicated region
    $region14: #{autoencoder_forward.1} parent=1 // pred_check
      _
    $region15: #{autoencoder_forward.1} parent=1 // pred_check_branch
      %18 = sbr.rel (0) target = $region17
    $region16: #{autoencoder_forward.1} parent=1 // pred_region
      _
    $region17: #{autoencoder_forward.1} parent=1 // pred_fallthru
      _
    // Predicated region
    $region18: #{autoencoder_forward.1} parent=1 // pred_check
      _
    $region19: #{autoencoder_forward.1} parent=1 // pred_check_branch
      %20 = sbr.rel (0) target = $region21
    $region20: #{autoencoder_forward.1} parent=1 // pred_region
      _
    $region21: #{autoencoder_forward.1} parent=1 // pred_fallthru
      _
    %v22 = vld [vmem:[%s0] sm:$0xff]
    %v23 = vpack.c.bf16 %v22, %v22
    %v24 = vld [vmem:[%s1] sm:$0xff]
    %v25 = vld [vmem:[%s1 + $0x8] sm:$0xff]
    %v26 = vpack.c.bf16 %v25, %v24
    %v27 = vld [vmem:[%s3] sm:$0xff]
    %v28 = vld [vmem:[%s3 + $0x8] sm:$0xff]
    %v29 = vld [vmem:[%s3 + $0x10] sm:$0xff]
    %v30 = vld [vmem:[%s3 + $0x18] sm:$0xff]
    %v31 = vpack.c.bf16 %v28, %v27
    %v32 = vpack.c.bf16 %v30, %v29
    %v33 = vld [vmem:[%s2] sm:$0x1]
    %v35 = vlaneseq
    %v36 = vshrl.u32 %v35, 7
    %v37 = vsub.s32 0, %v36
    %v38 = vrot.slane %v33, %v37
    %vm40 = vcmask 261120
    %v42 = vsel %vm40, %v23, 0
    %v45 = vsel %vm40, %v26, 0
    %47 = vmatprep.subr.bf16.mxu0 0
    %48 = vmatpush1.bf16.xpose.msra.mxu0 %v45
    %49 = vmatprep.subr.bf16.mxu0 0
    %50 = vmatpush1.bf16.xpose.msra.mxu0 0
    %51 = vmatprep.subr.bf16.mxu0 0
    %52 = vmatpush1.bf16.xpose.msra.mxu0 0
    %53 = vmatprep.subr.bf16.mxu0 0
    %54 = vmatpush1.bf16.xpose.msra.mxu0 0
    %55 = vmatprep.subr.bf16.mxu0 0
    %56 = vmatpush1.bf16.xpose.msra.mxu0 0
    %57 = vmatprep.subr.bf16.mxu0 0
    %58 = vmatpush1.bf16.xpose.msra.mxu0 0
    %59 = vmatprep.subr.bf16.mxu0 0
    %60 = vmatpush1.bf16.xpose.msra.mxu0 0
    %61 = vmatprep.subr.bf16.mxu0 0
    %62 = vmatpush1.bf16.xpose.msra.mxu0 0
    %63 = vmatprep.subr.bf16.mxu0 0
    %64 = vmatpush1.bf16.xpose.msra.mxu0 0
    %65 = vmatprep.subr.bf16.mxu0 0
    %66 = vmatpush1.bf16.xpose.msra.mxu0 0
    %67 = vmatprep.subr.bf16.mxu0 0
    %68 = vmatpush1.bf16.xpose.msra.mxu0 0
    %69 = vmatprep.subr.bf16.mxu0 0
    %70 = vmatpush1.bf16.xpose.msra.mxu0 0
    %71 = vmatprep.subr.bf16.mxu0 0
    %72 = vmatpush1.bf16.xpose.msra.mxu0 0
    %73 = vmatprep.subr.bf16.mxu0 0
    %74 = vmatpush1.bf16.xpose.msra.mxu0 0
    %75 = vmatprep.subr.bf16.mxu0 0
    %76 = vmatpush1.bf16.xpose.msra.mxu0 0
    %77 = vmatprep.subr.bf16.mxu0 0
    %78 = vmatpush1.bf16.xpose.msra.mxu0 0
    %79 = vmatprep.mubr.bf16.mxu0 0
    %80 = vmatmul.mubr.bf16.gmra.mrb[0].mxu0 %v42
    %v81 = vpop.f32.mrb[0].mxu0
    %v82 = vadd.f32 %v38, %v81
    %v83 = vpop.f32.mrb[0].mxu0
    %v84 = vpop.f32.mrb[0].mxu0
    %v85 = vpop.f32.mrb[0].mxu0
    %86 = vdwg.mxu0
    %v87 = vxor.u32 %v82, 2147483648
    %v88 = vmul.f32 %v87, 1.442695
    %v89 = vpow.pop %v88
    %v90 = vadd.f32 %v89, 1.0
    %v91 = vrcp.pop %v90
    %v92 = vmul.f32 1.0, %v91
    %v93 = vpack.c.bf16 %v92, %v92
    %v94 = vld [vmem:[%s4] sm:$0x1]
    %v96 = vlaneseq
    %v97 = vshrl.u32 %v96, 7
    %v98 = vsub.s32 0, %v97
    %v99 = vrot.slane %v94, %v98
    %vm101 = vcmask 130048
    %v103 = vsel %vm101, %v93, 0
    %v106 = vsel %vm101, %v31, 0
    %v109 = vsel %vm101, %v32, 0
    %111 = vmatprep.subr.bf16.mxu0 0
    %112 = vmatpush1.bf16.xpose.msra.mxu0 %v106
    %113 = vmatprep.subr.bf16.mxu0 0
    %114 = vmatpush1.bf16.xpose.msra.mxu0 %v109
    %115 = vmatprep.subr.bf16.mxu0 0
    %116 = vmatpush1.bf16.xpose.msra.mxu0 0
    %117 = vmatprep.subr.bf16.mxu0 0
    %118 = vmatpush1.bf16.xpose.msra.mxu0 0
    %119 = vmatprep.subr.bf16.mxu0 0
    %120 = vmatpush1.bf16.xpose.msra.mxu0 0
    %121 = vmatprep.subr.bf16.mxu0 0
    %122 = vmatpush1.bf16.xpose.msra.mxu0 0
    %123 = vmatprep.subr.bf16.mxu0 0
    %124 = vmatpush1.bf16.xpose.msra.mxu0 0
    %125 = vmatprep.subr.bf16.mxu0 0
    %126 = vmatpush1.bf16.xpose.msra.mxu0 0
    %127 = vmatprep.subr.bf16.mxu0 0
    %128 = vmatpush1.bf16.xpose.msra.mxu0 0
    %129 = vmatprep.subr.bf16.mxu0 0
    %130 = vmatpush1.bf16.xpose.msra.mxu0 0
    %131 = vmatprep.subr.bf16.mxu0 0
    %132 = vmatpush1.bf16.xpose.msra.mxu0 0
    %133 = vmatprep.subr.bf16.mxu0 0
    %134 = vmatpush1.bf16.xpose.msra.mxu0 0
    %135 = vmatprep.subr.bf16.mxu0 0
    %136 = vmatpush1.bf16.xpose.msra.mxu0 0
    %137 = vmatprep.subr.bf16.mxu0 0
    %138 = vmatpush1.bf16.xpose.msra.mxu0 0
    %139 = vmatprep.subr.bf16.mxu0 0
    %140 = vmatpush1.bf16.xpose.msra.mxu0 0
    %141 = vmatprep.subr.bf16.mxu0 0
    %142 = vmatpush1.bf16.xpose.msra.mxu0 0
    %143 = vmatprep.mubr.bf16.mxu0 0
    %144 = vmatmul.mubr.bf16.gmra.mrb[0].mxu0 %v103
    %v145 = vpop.f32.mrb[0].mxu0
    %v146 = vadd.f32 %v99, %v145
    %v147 = vpop.f32.mrb[0].mxu0
    %v148 = vpop.f32.mrb[0].mxu0
    %v149 = vpop.f32.mrb[0].mxu0
    %150 = vdwg.mxu0
    %151 = vst.msk [vmem:[#allocation2] sm:$0xff] %vm40, %v146
    // Predicated region
    $region22: #{autoencoder_forward.1} parent=1 // pred_check
      _
    $region23: #{autoencoder_forward.1} parent=1 // pred_check_branch
      %153 = sbr.rel (0) target = $region25
    $region24: #{autoencoder_forward.1} parent=1 // pred_region
      %s155 = ssub.s32 128, 128
      %156 = vsyncadd [#allocation3], %s155
      %s158 = sshll.u32 [#allocation2], 4
      %s159 = int_to_ptr.vmem [resolvable:$true] %s158
      %161 = dma.vmem_to_hbm [thread:$0]  %s159, 128, %s5, [#allocation3]
    $region25: #{autoencoder_forward.1} parent=1 // pred_fallthru
      _
    // Predicated region
    $region26: #{autoencoder_forward.1} parent=1 // pred_check
      _
    $region27: #{autoencoder_forward.1} parent=1 // pred_check_branch
      %163 = sbr.rel (0) target = $region29
    $region28: #{autoencoder_forward.1} parent=1 // pred_region
      %164 = dma.done [#allocation3], 128
    $region29: #{autoencoder_forward.1} parent=1 // pred_fallthru
      _
    %165 = vsyncpa [#allocation3], 1

</llo_original>
